<compile_context>
chip_gen: v5e
topology: v5e:2x2
jax: 0.10.0
libtpu: 0.0.40
codegen_flags: <defaults>
</compile_context>

<pallas_src>
import jax
import jax.numpy as jnp
import numpy as np
from jax import lax
from jax.experimental import pallas as pl
from jax.experimental.pallas import tpu as pltpu


def transition_kernel(x_ref, scale_ref, shift_ref, w_ref, o_ref):
    # x_ref:     (tM, 2, Wout, 2*Cp)  row-paired, column-pair-folded NHWC view (f32)
    # scale_ref: (1, 2*Cp)            folded BN scale (zero on padded channels)
    # shift_ref: (1, 2*Cp)            folded BN shift (zero on padded channels)
    # w_ref:     (2*Cp, Gp) bf16      1x1 conv weight, horizontal pool taps stacked
    #                                 on K, 1/4 average factor folded in, G->Gp pad
    # o_ref:     (tM, Wout, Gp)       pooled conv output (lane-dense, Gp % 128 == 0)
    tM, _, Wout, C2 = x_ref.shape
    Gp = o_ref.shape[2]

    sc = scale_ref[...]                       # (1, 2*Cp) -> broadcasts over (tM, Wout, 2*Cp)
    sh = shift_ref[...]

    x = x_ref[...]                            # (tM, 2, Wout, 2*Cp)
    x_even = x[:, 0]                          # rows 2h
    x_odd = x[:, 1]                           # rows 2h+1

    # BN affine + ReLU, then vertical (row) pool as a single add; the 1/4
    # average factor and the horizontal (column) pool live in w_ref.
    rsum = (jnp.maximum(x_even * sc + sh, 0.0) +
            jnp.maximum(x_odd * sc + sh, 0.0))            # (tM, Wout, 2*Cp)

    # One GEMM: (tM*Wout, 2*Cp) x (2*Cp, Gp); bf16 operands, f32 accumulation.
    s = rsum.reshape(tM * Wout, C2).astype(jnp.bfloat16)
    acc = jnp.dot(s, w_ref[...], preferred_element_type=jnp.float32)

    o_ref[...] = acc.reshape(tM, Wout, Gp).astype(o_ref.dtype)


def transition_forward(x_nchw, gamma, beta, conv_w_oihw, eps=1e-5):
    """Forward pass matching the PyTorch Transition module (training-mode BN).

    x_nchw:      (N, C, H, W) float32
    gamma, beta: (C,) BN affine params
    conv_w_oihw: (G, C, 1, 1) 1x1 conv weight (PyTorch OIHW, bias=False)
    returns:     (N, G, H//2, W//2) float32
    """
    N, C, H, W = x_nchw.shape
    G = conv_w_oihw.shape[0]
    assert H % 2 == 0 and W % 2 == 0, "avg_pool2d(2) needs even spatial dims"
    Hout, Wout = H // 2, W // 2

    # Lane-dense padding: 2*Cp and Gp must be multiples of 128.
    Cp = ((C + 63) // 64) * 64
    Gp = ((G + 127) // 128) * 128

    # ---- BN batch statistics in ONE pass over x (biased var, training mode) ----
    cnt = float(N * H * W)
    s1 = jnp.sum(x_nchw, axis=(0, 2, 3))
    s2 = jnp.sum(x_nchw * x_nchw, axis=(0, 2, 3))
    mean = s1 / cnt
    var = jnp.maximum(s2 / cnt - mean * mean, 0.0)
    scale = gamma / jnp.sqrt(var + eps)
    shift = beta - mean * scale

    # Zero-pad folded BN params so padded channels stay exactly zero post-ReLU.
    scale_p = jnp.pad(scale, (0, Cp - C))
    shift_p = jnp.pad(shift, (0, Cp - C))
    scale2 = jnp.tile(scale_p, 2).reshape(1, 2 * Cp).astype(jnp.float32)
    shift2 = jnp.tile(shift_p, 2).reshape(1, 2 * Cp).astype(jnp.float32)

    # ---- weight prep: (G,C,1,1) -> (Cp,Gp), stack pool taps on K, fold 1/4 ----
    w = jnp.transpose(conv_w_oihw[:, :, 0, 0], (1, 0))              # (C, G)
    w = jnp.pad(w, ((0, Cp - C), (0, Gp - G)))                      # (Cp, Gp)
    w2 = (0.25 * jnp.concatenate([w, w], axis=0)).astype(jnp.bfloat16)  # (2*Cp, Gp)

    # ---- single NCHW->NHWC transpose (+ channel pad folded into that pass) ----
    x_nhwc = jnp.transpose(x_nchw, (0, 2, 3, 1))                    # (N, H, W, C)
    if Cp != C:
        x_nhwc = jnp.pad(x_nhwc, ((0, 0), (0, 0), (0, 0), (0, Cp - C)))
    # Free contiguous reshape: row pairs split out, column pairs folded onto the
    # lane axis, batch and pooled-row dims merged into one M axis.
    x4 = x_nhwc.reshape(N * Hout, 2, Wout, 2 * Cp)

    # ---- tile selection: big blocks, >=2 parallel steps, conservative VMEM ----
    M = N * Hout
    bytes_per_row = (2 * Wout * 2 * Cp + Wout * Gp) * 4             # in + out, f32
    invariant_bytes = (2 * Cp) * Gp * 2 + 2 * (2 * Cp * 4)          # bf16 W + scale/shift
    block_budget = 36 * (1 << 20) - 2 * invariant_bytes             # safe on v5e/v6e/v7x
    tM = 1
    for cand in range(1, M + 1):
        if M % cand:
            continue
        if M >= 2 and M // cand < 2:        # keep both v7x TensorCores fed
            continue
        if 2 * cand * bytes_per_row <= block_budget:
            tM = cand
    grid = (M // tM,)

    needed = 2 * tM * bytes_per_row + 2 * invariant_bytes
    vmem_limit = int(min(max(needed + 4 * (1 << 20), 16 * (1 << 20)), 48 * (1 << 20)))

    out_p = pl.pallas_call(
        transition_kernel,
        out_shape=jax.ShapeDtypeStruct((M, Wout, Gp), jnp.float32),
        grid_spec=pltpu.PrefetchScalarGridSpec(
            num_scalar_prefetch=0,
            grid=grid,
            in_specs=[
                pl.BlockSpec((tM, 2, Wout, 2 * Cp), lambda m: (m, 0, 0, 0)),
                pl.BlockSpec((1, 2 * Cp), lambda m: (0, 0)),
                pl.BlockSpec((1, 2 * Cp), lambda m: (0, 0)),
                pl.BlockSpec((2 * Cp, Gp), lambda m: (0, 0)),
            ],
            out_specs=pl.BlockSpec((tM, Wout, Gp), lambda m: (m, 0, 0)),
        ),
        compiler_params=pltpu.CompilerParams(
            dimension_semantics=("parallel",),
            vmem_limit_bytes=vmem_limit),
    )(x4, scale2, shift2, w2)

    # Slice away lane padding during the (required anyway) NHWC->NCHW pass.
    out_nhwc = out_p.reshape(N, Hout, Wout, Gp)[..., :G]
    return jnp.transpose(out_nhwc, (0, 3, 1, 2))                    # (N, G, Hout, Wout)


def _reference_forward(x_nchw, gamma, beta, conv_w_oihw, eps=1e-5):
    """Pure-JAX f32 reference (BN[train] + ReLU + Conv1x1 + AvgPool2x2)."""
    N, C, H, W = x_nchw.shape
    G = conv_w_oihw.shape[0]
    mean = jnp.mean(x_nchw, axis=(0, 2, 3), keepdims=True)
    var = jnp.mean((x_nchw - mean) ** 2, axis=(0, 2, 3), keepdims=True)
    xn = (x_nchw - mean) / jnp.sqrt(var + eps)
    xn = xn * gamma[None, :, None, None] + beta[None, :, None, None]
    a = jnp.maximum(xn, 0.0)
    conv = lax.conv_general_dilated(
        a, conv_w_oihw, window_strides=(1, 1), padding="VALID",
        dimension_numbers=("NCHW", "OIHW", "NCHW"))
    pooled = conv.reshape(N, G, H // 2, 2, W // 2, 2).mean(axis=(3, 5))
    return pooled


if __name__ == "__main__":
    # small-but-representative shapes: batch=2, nChannels=32, spatial=32,
    # nOutChannels=64 (channels padded to lane-dense 2*Cp=128 / Gp=128 inside)
    N, C, H, W, G = 2, 32, 32, 32, 64

    key = jax.random.PRNGKey(0)
    kx, kg, kb, kw = jax.random.split(key, 4)
    x = jax.random.normal(kx, (N, C, H, W), dtype=jnp.float32)
    gamma = 1.0 + 0.1 * jax.random.normal(kg, (C,), dtype=jnp.float32)
    beta = 0.1 * jax.random.normal(kb, (C,), dtype=jnp.float32)
    fan_in = C * 1 * 1                      # 1x1 conv, PyTorch-style init scale
    conv_w = jax.random.uniform(kw, (G, C, 1, 1), dtype=jnp.float32,
                                minval=-1.0, maxval=1.0) / np.sqrt(fan_in)

    out = jax.block_until_ready(transition_forward(x, gamma, beta, conv_w))
    ref = jax.block_until_ready(_reference_forward(x, gamma, beta, conv_w))

    assert out.shape == (N, G, H // 2, W // 2)
    # bf16 MXU operands -> loosened tolerance vs the f32 reference
    np.testing.assert_allclose(np.asarray(out), np.asarray(ref),
                               rtol=2e-2, atol=2e-2)

    print("KERNEL_OK")
</pallas_src>

<mosaic_0001>
module attributes {stable_mosaic.version = 11 : i64} {
  func.func @transition_kernel(%arg0: i32, %arg1: memref<16x2x16x128xf32, #tpu.memory_space<vmem>>, %arg2: memref<1x128xf32, #tpu.memory_space<vmem>>, %arg3: memref<1x128xf32, #tpu.memory_space<vmem>>, %arg4: memref<128x128xbf16, #tpu.memory_space<vmem>>, %arg5: memref<16x16x128xf32, #tpu.memory_space<vmem>>) attributes {dimension_semantics = [#tpu.dimension_semantics<parallel>], iteration_bounds = array<i64: 2>, scalar_prefetch = 0 : i64, scratch_operands = 0 : i64, tpu.core_type = #tpu.core_type<tc>, window_params = [{transform_indices = @transform_0, window_bounds = array<i64: 16, 2, 16, 128>}, {pipeline_mode = #tpu.pipeline_mode<synchronous>, transform_indices = @transform_1, window_bounds = array<i64: 1, 128>}, {pipeline_mode = #tpu.pipeline_mode<synchronous>, transform_indices = @transform_2, window_bounds = array<i64: 1, 128>}, {pipeline_mode = #tpu.pipeline_mode<synchronous>, transform_indices = @transform_3, window_bounds = array<i64: 128, 128>}, {transform_indices = @transform_4, window_bounds = array<i64: 16, 16, 128>}]} {
    %c0 = arith.constant 0 : index
    %c0_0 = arith.constant 0 : index
    %0 = vector.load %arg2[%c0, %c0_0] : memref<1x128xf32, #tpu.memory_space<vmem>>, vector<1x128xf32>
    %c0_1 = arith.constant 0 : index
    %c0_2 = arith.constant 0 : index
    %1 = vector.load %arg3[%c0_1, %c0_2] : memref<1x128xf32, #tpu.memory_space<vmem>>, vector<1x128xf32>
    %c0_3 = arith.constant 0 : index
    %c0_4 = arith.constant 0 : index
    %c0_5 = arith.constant 0 : index
    %c0_6 = arith.constant 0 : index
    %2 = vector.load %arg1[%c0_3, %c0_4, %c0_5, %c0_6] : memref<16x2x16x128xf32, #tpu.memory_space<vmem>>, vector<16x2x16x128xf32>
    %3 = vector.extract_strided_slice %2 {offsets = [0, 0, 0, 0], sizes = [16, 1, 16, 128], strides = [1, 1, 1, 1]} : vector<16x2x16x128xf32> to vector<16x1x16x128xf32>
    %4 = vector.shape_cast %3 : vector<16x1x16x128xf32> to vector<16x16x128xf32>
    %5 = vector.extract_strided_slice %2 {offsets = [0, 1, 0, 0], sizes = [16, 1, 16, 128], strides = [1, 1, 1, 1]} : vector<16x2x16x128xf32> to vector<16x1x16x128xf32>
    %6 = vector.shape_cast %5 : vector<16x1x16x128xf32> to vector<16x16x128xf32>
    %7 = vector.shape_cast %0 : vector<1x128xf32> to vector<1x1x128xf32>
    %8 = vector.broadcast %7 : vector<1x1x128xf32> to vector<16x16x128xf32>
    %9 = arith.mulf %4, %8 : vector<16x16x128xf32>
    %10 = vector.shape_cast %1 : vector<1x128xf32> to vector<1x1x128xf32>
    %11 = vector.broadcast %10 : vector<1x1x128xf32> to vector<16x16x128xf32>
    %12 = arith.addf %9, %11 : vector<16x16x128xf32>
    %cst = arith.constant 0.000000e+00 : f32
    %13 = vector.broadcast %cst : f32 to vector<16x16x128xf32>
    %14 = arith.maximumf %12, %13 : vector<16x16x128xf32>
    %15 = vector.shape_cast %0 : vector<1x128xf32> to vector<1x1x128xf32>
    %16 = vector.broadcast %15 : vector<1x1x128xf32> to vector<16x16x128xf32>
    %17 = arith.mulf %6, %16 : vector<16x16x128xf32>
    %18 = vector.shape_cast %1 : vector<1x128xf32> to vector<1x1x128xf32>
    %19 = vector.broadcast %18 : vector<1x1x128xf32> to vector<16x16x128xf32>
    %20 = arith.addf %17, %19 : vector<16x16x128xf32>
    %cst_7 = arith.constant 0.000000e+00 : f32
    %21 = vector.broadcast %cst_7 : f32 to vector<16x16x128xf32>
    %22 = arith.maximumf %20, %21 : vector<16x16x128xf32>
    %23 = arith.addf %14, %22 : vector<16x16x128xf32>
    %24 = vector.shape_cast %23 : vector<16x16x128xf32> to vector<256x128xf32>
    %25 = arith.truncf %24 : vector<256x128xf32> to vector<256x128xbf16>
    %c0_8 = arith.constant 0 : index
    %c0_9 = arith.constant 0 : index
    %26 = vector.load %arg4[%c0_8, %c0_9] : memref<128x128xbf16, #tpu.memory_space<vmem>>, vector<128x128xbf16>
    %cst_10 = arith.constant dense<0.000000e+00> : vector<256x128xf32>
    %27 = tpu.matmul %25, %26, %cst_10 {dimension_numbers = #tpu.dot_dimension_numbers<[1], [0], [0], [1], [0, 0, 1, 1], [], []>} : vector<256x128xbf16>, vector<128x128xbf16>, vector<256x128xf32> -> vector<256x128xf32>
    %28 = vector.shape_cast %27 : vector<256x128xf32> to vector<16x16x128xf32>
    %c0_11 = arith.constant 0 : index
    %c0_12 = arith.constant 0 : index
    %c0_13 = arith.constant 0 : index
    %29 = vector.load %arg5[%c0_11, %c0_12, %c0_13] : memref<16x16x128xf32, #tpu.memory_space<vmem>>, vector<16x16x128xf32>
    tpu.vector_store %arg5[%c0_11, %c0_12, %c0_13], %28 {strides = array<i32>} : memref<16x16x128xf32, #tpu.memory_space<vmem>>, vector<16x16x128xf32>,
    return
  }
  func.func @transform_0(%arg0: i32) -> (i32, i32, i32, i32) {
    %c0_i32 = arith.constant 0 : i32
    %c0_i32_0 = arith.constant 0 : i32
    %c0_i32_1 = arith.constant 0 : i32
    %c0_i32_2 = arith.constant 0 : i32
    return %arg0, %c0_i32, %c0_i32_0, %c0_i32_1 : i32, i32, i32, i32
  }
  func.func @transform_1(%arg0: i32) -> (i32, i32) {
    %c0_i32 = arith.constant 0 : i32
    %c0_i32_0 = arith.constant 0 : i32
    %c0_i32_1 = arith.constant 0 : i32
    return %c0_i32, %c0_i32_0 : i32, i32
  }
  func.func @transform_2(%arg0: i32) -> (i32, i32) {
    %c0_i32 = arith.constant 0 : i32
    %c0_i32_0 = arith.constant 0 : i32
    %c0_i32_1 = arith.constant 0 : i32
    return %c0_i32, %c0_i32_0 : i32, i32
  }
  func.func @transform_3(%arg0: i32) -> (i32, i32) {
    %c0_i32 = arith.constant 0 : i32
    %c0_i32_0 = arith.constant 0 : i32
    %c0_i32_1 = arith.constant 0 : i32
    return %c0_i32, %c0_i32_0 : i32, i32
  }
  func.func @transform_4(%arg0: i32) -> (i32, i32, i32) {
    %c0_i32 = arith.constant 0 : i32
    %c0_i32_0 = arith.constant 0 : i32
    %c0_i32_1 = arith.constant 0 : i32
    return %arg0, %c0_i32, %c0_i32_0 : i32, i32, i32
  }
}

</mosaic_0001>

<llo_original>
// kernel: tpu_custom_call.1
$region0: #{tpu_custom_call.1}
  #allocation0 [shape = 'u32[]', space=smem, size = 0x4, offset = 0x4, fixed_abs, tag = 'smem constant byte address 0x4 - core index']
  #allocation1 [shape = 'u32[72,128]{1,0:T(1,128)}', space=vmem, size = 0x9000, scoped, tag = 'internal scratch']
  %s0 = inlined_call_operand.hbm [shape: f32[32,2,16,128], index: 0, kind: input, shape index: {}]
  %s1 = inlined_call_operand.hbm [shape: f32[1,128], index: 1, kind: input, shape index: {}]
  %s2 = inlined_call_operand.vmem [shape: f32[1,128], index: 2, kind: input, shape index: {}]
  %s3 = inlined_call_operand.hbm [shape: bf16[128,128], index: 3, kind: input, shape index: {}]
  %s4 = inlined_call_operand.hbm [shape: f32[32,16,128], index: 4, kind: output, shape index: {}]
  %s5 = sld [smem:[#allocation0]]
  $region61: #{tpu_custom_call.1} parent=0
    _
  %s7 = ssub.s32 1, %s5
  %s8 = scalar_select 0, %s7, %s5
  $region1: #{tpu_custom_call.1} parent=0
    #allocation2 [shape = 'u8[524288]{0}', space=vmem, size = 0x80000, scoped, tag = 'input window, operand 0']
    #allocation3 [shape = 's32[2]{0}', space=sflag, size = 0x8, scoped, tag = 'scoped memory for tpu_custom_call.1']
    #allocation4 [shape = 's32[2]{0}', space=sflag, size = 0x8, scoped, tag = 'scoped memory for tpu_custom_call.1']
    #allocation5 [shape = 'u8[512]{0}', space=vmem, size = 0x400, scoped, tag = 'input window, operand 1, single buffered']
    #allocation6 [shape = 's32[1]{0}', space=sflag, size = 0x4, scoped, tag = 'scoped memory for tpu_custom_call.1']
    #allocation7 [shape = 'u8[32768]{0}', space=vmem, size = 0x8000, scoped, tag = 'input window, operand 3, single buffered']
    #allocation8 [shape = 'u8[262144]{0}', space=vmem, size = 0x40000, scoped, tag = 'output window, operand 0']
    %9 = vsyncpa [#allocation3], 0
    %s10 = scalar_lea.sflag [#allocation3], 1
    %11 = vsyncpa %s10, 0
    %12 = vsyncpa [#allocation6], 0
    %13 = vsyncpa [#allocation4], 0
    %s14 = scalar_lea.sflag [#allocation4], 1
    %15 = vsyncpa %s14, 0
    loop: start=0, step=1, limit=4
    $region2: #{tpu_custom_call.1} parent=1 // loop_pre_header
      _
    $region3: #{tpu_custom_call.1} parent=1 // loop_header
      %s17 = sphi 0, %s21
      %p18 = scmp.ge.s32.totalorder %s17, 4
      %s27 = sphi 0, %s29
      %s30 = sphi 0, %s27
      %s31 = sphi 0, %s30
      %s47 = sphi 0, %s31
      %s51 = sphi 0, %s51
      %s53 = sphi 0, %s51
      %s54 = sphi 0, %s53
      %s68 = sphi 0, %s54
      %s72 = sphi 0, %s72
      %s74 = sphi 0, %s72
      %s75 = sphi 0, %s74
      %s89 = sphi 0, %s75
      %s93 = sphi 0, %s93
      %s95 = sphi 0, %s93
      %s96 = sphi 0, %s95
      %s110 = sphi 0, %s96
      %s116 = sphi 0, %s118
      %s119 = sphi 0, %s116
      %s120 = sphi 0, %s119
      %s136 = sphi 0, %s120
    $region4: #{tpu_custom_call.1} parent=1 // loop_header_branch
      %20 = sbr.rel (%p18) target = $region8
    $region5: #{tpu_custom_call.1} parent=1 // loop_body
      %s22 = ssub.s32 %s17, 1
      %s23 = ssub.s32 %s17, 2
      %s24 = sadd.s32 %s17, 1
      %s25 = ssub.s32 %s17, %s24
      %p26 = scmp.eq.s32.totalorder %s25, 0
      %s28 = sadd.s32 %s27, 1
      %s29 = scalar_select %p26, %s27, %s28
      %p32 = pneg %p26
      %p33 = scmp.eq.s32.totalorder %s17, 1
      %p34 = por %p32, %p33
      %p35 = scmp.ne.s32.totalorder %s27, %s30
      %p36 = scmp.eq.s32.totalorder %s17, 0
      %p37 = por %p35, %p36
      %p38 = scmp.ne.s32.totalorder %s27, %s30
      %p39 = scmp.eq.s32.totalorder %s22, 1
      %p40 = por %p38, %p39
      %p41 = scmp.ne.s32.totalorder %s30, %s31
      %p42 = scmp.eq.s32.totalorder %s22, 0
      %p43 = por %p41, %p42
      %p44 = scmp.ne.s32.totalorder %s30, %s31
      %p45 = scmp.eq.s32.totalorder %s23, 1
      %p46 = por %p44, %p45
      %p48 = scmp.ne.s32.totalorder %s31, %s47
      %p49 = scmp.eq.s32.totalorder %s23, 0
      %p50 = por %p48, %p49
      %s52 = sadd.s32 %s51, 1
      %p55 = scmp.eq.s32.totalorder %s17, 1
      %p56 = scmp.ne.s32.totalorder %s51, %s53
      %p57 = scmp.eq.s32.totalorder %s17, 0
      %p58 = por %p56, %p57
      %p59 = scmp.ne.s32.totalorder %s51, %s53
      %p60 = scmp.eq.s32.totalorder %s22, 1
      %p61 = por %p59, %p60
      %p62 = scmp.ne.s32.totalorder %s53, %s54
      %p63 = scmp.eq.s32.totalorder %s22, 0
      %p64 = por %p62, %p63
      %p65 = scmp.ne.s32.totalorder %s53, %s54
      %p66 = scmp.eq.s32.totalorder %s23, 1
      %p67 = por %p65, %p66
      %p69 = scmp.ne.s32.totalorder %s54, %s68
      %p70 = scmp.eq.s32.totalorder %s23, 0
      %p71 = por %p69, %p70
      %s73 = sadd.s32 %s72, 1
      %p76 = scmp.eq.s32.totalorder %s17, 1
      %p77 = scmp.ne.s32.totalorder %s72, %s74
      %p78 = scmp.eq.s32.totalorder %s17, 0
      %p79 = por %p77, %p78
      %p80 = scmp.ne.s32.totalorder %s72, %s74
      %p81 = scmp.eq.s32.totalorder %s22, 1
      %p82 = por %p80, %p81
      %p83 = scmp.ne.s32.totalorder %s74, %s75
      %p84 = scmp.eq.s32.totalorder %s22, 0
      %p85 = por %p83, %p84
      %p86 = scmp.ne.s32.totalorder %s74, %s75
      %p87 = scmp.eq.s32.totalorder %s23, 1
      %p88 = por %p86, %p87
      %p90 = scmp.ne.s32.totalorder %s75, %s89
      %p91 = scmp.eq.s32.totalorder %s23, 0
      %p92 = por %p90, %p91
      %s94 = sadd.s32 %s93, 1
      %p97 = scmp.eq.s32.totalorder %s17, 1
      %p98 = scmp.ne.s32.totalorder %s93, %s95
      %p99 = scmp.eq.s32.totalorder %s17, 0
      %p100 = por %p98, %p99
      %p101 = scmp.ne.s32.totalorder %s93, %s95
      %p102 = scmp.eq.s32.totalorder %s22, 1
      %p103 = por %p101, %p102
      %p104 = scmp.ne.s32.totalorder %s95, %s96
      %p105 = scmp.eq.s32.totalorder %s22, 0
      %p106 = por %p104, %p105
      %p107 = scmp.ne.s32.totalorder %s95, %s96
      %p108 = scmp.eq.s32.totalorder %s23, 1
      %p109 = por %p107, %p108
      %p111 = scmp.ne.s32.totalorder %s96, %s110
      %p112 = scmp.eq.s32.totalorder %s23, 0
      %p113 = por %p111, %p112
      %s114 = ssub.s32 %s17, %s24
      %p115 = scmp.eq.s32.totalorder %s114, 0
      %s117 = sadd.s32 %s116, 1
      %s118 = scalar_select %p115, %s116, %s117
      %p121 = pneg %p115
      %p122 = scmp.eq.s32.totalorder %s17, 1
      %p123 = por %p121, %p122
      %p124 = scmp.ne.s32.totalorder %s116, %s119
      %p125 = scmp.eq.s32.totalorder %s17, 0
      %p126 = por %p124, %p125
      %p127 = scmp.ne.s32.totalorder %s116, %s119
      %p128 = scmp.eq.s32.totalorder %s22, 1
      %p129 = por %p127, %p128
      %p130 = scmp.ne.s32.totalorder %s119, %s120
      %p131 = scmp.eq.s32.totalorder %s22, 0
      %p132 = por %p130, %p131
      %p133 = scmp.ne.s32.totalorder %s119, %s120
      %p134 = scmp.eq.s32.totalorder %s23, 1
      %p135 = por %p133, %p134
      %p137 = scmp.ne.s32.totalorder %s120, %s136
      %p138 = scmp.eq.s32.totalorder %s23, 0
      %p139 = por %p137, %p138
      %p140 = scmp.le.s32.totalorder 1, %s17
      %p141 = scmp.lt.s32.totalorder %s17, 3
      %p142 = pnand %p140, %p141
      %p143 = pneg %p142
      // Predicated region
      $region9: #{tpu_custom_call.1} parent=5 // pred_check
        _
      $region10: #{tpu_custom_call.1} parent=5 // pred_check_branch
        %145 = sbr.rel (%p142) target = $region12
      $region11: #{tpu_custom_call.1} parent=5 // pred_region
        %s146 = ssub.s32 %s17, 1
        // Predicated region
        $region13: #{tpu_custom_call.1} parent=11 // pred_check
          %p147 = pneg %p64
        $region14: #{tpu_custom_call.1} parent=11 // pred_check_branch
          %149 = sbr.rel (%p147) target = $region16
        $region15: #{tpu_custom_call.1} parent=11 // pred_region
          %151 = vsyncadd [#allocation6], 0
          %s153 = sshll.u32 %s1, 4
          %s154 = int_to_ptr.hbm [resolvable:$true] %s153
          %s155 = sshll.u32 [#allocation5], 4
          %s156 = int_to_ptr.vmem [resolvable:$true] %s155
          %158 = dma.hbm_to_vmem [thread:$0]  %s154, 16, %s156, [#allocation6]
        $region16: #{tpu_custom_call.1} parent=11 // pred_fallthru
          _
        // Predicated region
        $region17: #{tpu_custom_call.1} parent=11 // pred_check
          %p159 = pneg %p85
        $region18: #{tpu_custom_call.1} parent=11 // pred_check_branch
          %161 = sbr.rel (%p159) target = $region20
        $region19: #{tpu_custom_call.1} parent=11 // pred_region
          _
        $region20: #{tpu_custom_call.1} parent=11 // pred_fallthru
          _
        // Predicated region
        $region21: #{tpu_custom_call.1} parent=11 // pred_check
          %p162 = pneg %p106
        $region22: #{tpu_custom_call.1} parent=11 // pred_check_branch
          %164 = sbr.rel (%p162) target = $region24
        $region23: #{tpu_custom_call.1} parent=11 // pred_region
          %166 = vsyncadd [#allocation6], 0
          %s167 = sshll.u32 %s3, 4
          %s168 = int_to_ptr.hbm [resolvable:$true] %s167
          %s169 = sshll.u32 [#allocation7], 4
          %s170 = int_to_ptr.vmem [resolvable:$true] %s169
          %175 = dma.hbm_to_vmem [thread:$0]  %s168, 1024, %s170, [#allocation6], 64, 64, 4
        $region24: #{tpu_custom_call.1} parent=11 // pred_fallthru
          _
      $region12: #{tpu_custom_call.1} parent=5 // pred_fallthru
        _
      %p176 = scmp.lt.s32.totalorder %s17, 2
      // Predicated region
      $region25: #{tpu_custom_call.1} parent=5 // pred_check
        %p177 = pneg %p176
      $region26: #{tpu_custom_call.1} parent=5 // pred_check_branch
        %179 = sbr.rel (%p177) target = $region28
      $region27: #{tpu_custom_call.1} parent=5 // pred_region
        // Predicated region
        $region29: #{tpu_custom_call.1} parent=27 // pred_check
          %p180 = pneg %p37
        $region30: #{tpu_custom_call.1} parent=27 // pred_check_branch
          %182 = sbr.rel (%p180) target = $region32
        $region31: #{tpu_custom_call.1} parent=27 // pred_region
          %s183 = sand.u32 %s27, 1
          %s184 = scalar_lea.sflag [#allocation3], %s183
          %s185 = sand.u32 %s27, 1
          %s186 = smul.addr %s185, 512
          %s187 = scalar_lea.vmem [#allocation2], %s186
          %s188 = smul.u32 16, %s17
          %190 = vsyncadd %s184, 0
          %s191 = smul.addr %s188, 4
          %s192 = smul.addr %s191, 8
          %s193 = scalar_lea.hbm %s0, %s192
          %s194 = sshll.u32 %s193, 4
          %s195 = int_to_ptr.hbm [resolvable:$true] %s194
          %s196 = sshll.u32 %s187, 4
          %s197 = int_to_ptr.vmem [resolvable:$true] %s196
          %202 = dma.hbm_to_vmem [thread:$0]  %s195, 8192, %s197, %s184, 128, 128, 8
        $region32: #{tpu_custom_call.1} parent=27 // pred_fallthru
          _
      $region28: #{tpu_custom_call.1} parent=5 // pred_fallthru
        _
      %p203 = scmp.le.s32.totalorder 1, %s17
      %p204 = scmp.lt.s32.totalorder %s17, 3
      %p205 = pnand %p203, %p204
      %p206 = pneg %p205
      // Predicated region
      $region33: #{tpu_custom_call.1} parent=5 // pred_check
        _
      $region34: #{tpu_custom_call.1} parent=5 // pred_check_branch
        %208 = sbr.rel (%p205) target = $region36
      $region35: #{tpu_custom_call.1} parent=5 // pred_region
        %s209 = ssub.s32 %s17, 1
        %s210 = sand.u32 %s30, 1
        %s211 = scalar_lea.sflag [#allocation3], %s210
        %s212 = sand.u32 %s30, 1
        %s213 = smul.addr %s212, 512
        %s214 = scalar_lea.vmem [#allocation2], %s213
        // Predicated region
        $region37: #{tpu_custom_call.1} parent=35 // pred_check
          %p215 = pneg %p43
        $region38: #{tpu_custom_call.1} parent=35 // pred_check_branch
          %217 = sbr.rel (%p215) target = $region40
        $region39: #{tpu_custom_call.1} parent=35 // pred_region
          %219 = dma.done %s211, 8192
        $region40: #{tpu_custom_call.1} parent=35 // pred_fallthru
          _
        // Predicated region
        $region41: #{tpu_custom_call.1} parent=35 // pred_check
          %p220 = pneg %p64
        $region42: #{tpu_custom_call.1} parent=35 // pred_check_branch
          %222 = sbr.rel (%p220) target = $region44
        $region43: #{tpu_custom_call.1} parent=35 // pred_region
          %224 = dma.done [#allocation6], 16
        $region44: #{tpu_custom_call.1} parent=35 // pred_fallthru
          _
        // Predicated region
        $region45: #{tpu_custom_call.1} parent=35 // pred_check
          %p225 = pneg %p106
        $region46: #{tpu_custom_call.1} parent=35 // pred_check_branch
          %227 = sbr.rel (%p225) target = $region48
        $region47: #{tpu_custom_call.1} parent=35 // pred_region
          %229 = dma.done [#allocation6], 1024
        $region48: #{tpu_custom_call.1} parent=35 // pred_fallthru
          _
        %s230 = sand.u32 %s30, 1
        %s231 = scalar_lea.sflag [#allocation3], %s230
        %s232 = sand.u32 %s30, 1
        %s233 = smul.addr %s232, 512
        %s234 = scalar_lea.vmem [#allocation2], %s233
        %p235 = pneg %p43
        %p236 = pneg %p40
        %p237 = pneg %p64
        %p238 = pneg %p61
        %p239 = pneg %p85
        %p240 = pneg %p82
        %p241 = pneg %p106
        %p242 = pneg %p103
        %p243 = pneg %p132
        %p244 = pneg %p129
        %s245 = sand.u32 %s119, 1
        %s246 = scalar_lea.sflag [#allocation4], %s245
        %s247 = sand.u32 %s119, 1
        %s248 = smul.addr %s247, 256
        %s249 = scalar_lea.vmem [#allocation8], %s248
        %s250 = smul.u32 16, %s22
        %s251 = smul.u32 16, %s22
        %v252 = vld [vmem:[#allocation5] sm:$0x1]
        %v253 = vld [vmem:[%s2] sm:$0x1]
        %v254 = vld [vmem:[%s214] sm:$0xff]
        %v255 = vld [vmem:[%s214 + $0x8] sm:$0xff]
        %v256 = vld [vmem:[%s214 + $0x10] sm:$0xff]
        %v257 = vld [vmem:[%s214 + $0x18] sm:$0xff]
        %v258 = vld [vmem:[%s214 + $0x20] sm:$0xff]
        %v259 = vld [vmem:[%s214 + $0x28] sm:$0xff]
        %v260 = vld [vmem:[%s214 + $0x30] sm:$0xff]
        %v261 = vld [vmem:[%s214 + $0x38] sm:$0xff]
        %v262 = vld [vmem:[%s214 + $0x40] sm:$0xff]
        %v263 = vld [vmem:[%s214 + $0x48] sm:$0xff]
        %v264 = vld [vmem:[%s214 + $0x50] sm:$0xff]
        %v265 = vld [vmem:[%s214 + $0x58] sm:$0xff]
        %v266 = vld [vmem:[%s214 + $0x60] sm:$0xff]
        %v267 = vld [vmem:[%s214 + $0x68] sm:$0xff]
        %v268 = vld [vmem:[%s214 + $0x70] sm:$0xff]
        %v269 = vld [vmem:[%s214 + $0x78] sm:$0xff]
        %v270 = vld [vmem:[%s214 + $0x80] sm:$0xff]
        %v271 = vld [vmem:[%s214 + $0x88] sm:$0xff]
        %v272 = vld [vmem:[%s214 + $0x90] sm:$0xff]
        %v273 = vld [vmem:[%s214 + $0x98] sm:$0xff]
        %v274 = vld [vmem:[%s214 + $0xa0] sm:$0xff]
        %v275 = vld [vmem:[%s214 + $0xa8] sm:$0xff]
        %v276 = vld [vmem:[%s214 + $0xb0] sm:$0xff]
        %v277 = vld [vmem:[%s214 + $0xb8] sm:$0xff]
        %v278 = vld [vmem:[%s214 + $0xc0] sm:$0xff]
        %v279 = vld [vmem:[%s214 + $0xc8] sm:$0xff]
        %v280 = vld [vmem:[%s214 + $0xd0] sm:$0xff]
        %v281 = vld [vmem:[%s214 + $0xd8] sm:$0xff]
        %v282 = vld [vmem:[%s214 + $0xe0] sm:$0xff]
        %v283 = vld [vmem:[%s214 + $0xe8] sm:$0xff]
        %v284 = vld [vmem:[%s214 + $0xf0] sm:$0xff]
        %v285 = vld [vmem:[%s214 + $0xf8] sm:$0xff]
        %v286 = vld [vmem:[%s214 + $0x100] sm:$0xff]
        %v287 = vld [vmem:[%s214 + $0x108] sm:$0xff]
        %v288 = vld [vmem:[%s214 + $0x110] sm:$0xff]
        %v289 = vld [vmem:[%s214 + $0x118] sm:$0xff]
        %v290 = vld [vmem:[%s214 + $0x120] sm:$0xff]
        %v291 = vld [vmem:[%s214 + $0x128] sm:$0xff]
        %v292 = vld [vmem:[%s214 + $0x130] sm:$0xff]
        %v293 = vld [vmem:[%s214 + $0x138] sm:$0xff]
        %v294 = vld [vmem:[%s214 + $0x140] sm:$0xff]
        %v295 = vld [vmem:[%s214 + $0x148] sm:$0xff]
        %v296 = vld [vmem:[%s214 + $0x150] sm:$0xff]
        %v297 = vld [vmem:[%s214 + $0x158] sm:$0xff]
        %v298 = vld [vmem:[%s214 + $0x160] sm:$0xff]
        %v299 = vld [vmem:[%s214 + $0x168] sm:$0xff]
        %v300 = vld [vmem:[%s214 + $0x170] sm:$0xff]
        %v301 = vld [vmem:[%s214 + $0x178] sm:$0xff]
        %v302 = vld [vmem:[%s214 + $0x180] sm:$0xff]
        %v303 = vld [vmem:[%s214 + $0x188] sm:$0xff]
        %v304 = vld [vmem:[%s214 + $0x190] sm:$0xff]
        %v305 = vld [vmem:[%s214 + $0x198] sm:$0xff]
        %v306 = vld [vmem:[%s214 + $0x1a0] sm:$0xff]
        %v307 = vld [vmem:[%s214 + $0x1a8] sm:$0xff]
        %v308 = vld [vmem:[%s214 + $0x1b0] sm:$0xff]
        %v309 = vld [vmem:[%s214 + $0x1b8] sm:$0xff]
        %v310 = vld [vmem:[%s214 + $0x1c0] sm:$0xff]
        %v311 = vld [vmem:[%s214 + $0x1c8] sm:$0xff]
        %v312 = vld [vmem:[%s214 + $0x1d0] sm:$0xff]
        %v313 = vld [vmem:[%s214 + $0x1d8] sm:$0xff]
        %v314 = vld [vmem:[%s214 + $0x1e0] sm:$0xff]
        %v315 = vld [vmem:[%s214 + $0x1e8] sm:$0xff]
        %v316 = vld [vmem:[%s214 + $0x1f0] sm:$0xff]
        %v317 = vld [vmem:[%s214 + $0x1f8] sm:$0xff]
        %v319 = vperm.slane %v252, 0
        %v321 = vmul.f32 %v254, %v319
        %v322 = vmul.f32 %v255, %v319
        %v323 = vmul.f32 %v258, %v319
        %v324 = vmul.f32 %v259, %v319
        %v325 = vmul.f32 %v262, %v319
        %v326 = vmul.f32 %v263, %v319
        %v327 = vmul.f32 %v266, %v319
        %v328 = vmul.f32 %v267, %v319
        %v329 = vmul.f32 %v270, %v319
        %v330 = vmul.f32 %v271, %v319
        %v331 = vmul.f32 %v274, %v319
        %v332 = vmul.f32 %v275, %v319
        %v333 = vmul.f32 %v278, %v319
        %v334 = vmul.f32 %v279, %v319
        %v335 = vmul.f32 %v282, %v319
        %v336 = vmul.f32 %v283, %v319
        %v337 = vmul.f32 %v286, %v319
        %v338 = vmul.f32 %v287, %v319
        %v339 = vmul.f32 %v290, %v319
        %v340 = vmul.f32 %v291, %v319
        %v341 = vmul.f32 %v294, %v319
        %v342 = vmul.f32 %v295, %v319
        %v343 = vmul.f32 %v298, %v319
        %v344 = vmul.f32 %v299, %v319
        %v345 = vmul.f32 %v302, %v319
        %v346 = vmul.f32 %v303, %v319
        %v347 = vmul.f32 %v306, %v319
        %v348 = vmul.f32 %v307, %v319
        %v349 = vmul.f32 %v310, %v319
        %v350 = vmul.f32 %v311, %v319
        %v351 = vmul.f32 %v314, %v319
        %v352 = vmul.f32 %v315, %v319
        %v354 = vperm.slane %v253, 0
        %v356 = vadd.f32 %v321, %v354
        %v357 = vadd.f32 %v322, %v354
        %v358 = vadd.f32 %v323, %v354
        %v359 = vadd.f32 %v324, %v354
        %v360 = vadd.f32 %v325, %v354
        %v361 = vadd.f32 %v326, %v354
        %v362 = vadd.f32 %v327, %v354
        %v363 = vadd.f32 %v328, %v354
        %v364 = vadd.f32 %v329, %v354
        %v365 = vadd.f32 %v330, %v354
        %v366 = vadd.f32 %v331, %v354
        %v367 = vadd.f32 %v332, %v354
        %v368 = vadd.f32 %v333, %v354
        %v369 = vadd.f32 %v334, %v354
        %v370 = vadd.f32 %v335, %v354
        %v371 = vadd.f32 %v336, %v354
        %v372 = vadd.f32 %v337, %v354
        %v373 = vadd.f32 %v338, %v354
        %v374 = vadd.f32 %v339, %v354
        %v375 = vadd.f32 %v340, %v354
        %v376 = vadd.f32 %v341, %v354
        %v377 = vadd.f32 %v342, %v354
        %v378 = vadd.f32 %v343, %v354
        %v379 = vadd.f32 %v344, %v354
        %v380 = vadd.f32 %v345, %v354
        %v381 = vadd.f32 %v346, %v354
        %v382 = vadd.f32 %v347, %v354
        %v383 = vadd.f32 %v348, %v354
        %v384 = vadd.f32 %v349, %v354
        %v385 = vadd.f32 %v350, %v354
        %v386 = vadd.f32 %v351, %v354
        %v387 = vadd.f32 %v352, %v354
        %v388 = vmax.f32 %v356, 0.0
        %v389 = vmax.f32 %v357, 0.0
        %v390 = vmax.f32 %v358, 0.0
        %v391 = vmax.f32 %v359, 0.0
        %v392 = vmax.f32 %v360, 0.0
        %v393 = vmax.f32 %v361, 0.0
        %v394 = vmax.f32 %v362, 0.0
        %v395 = vmax.f32 %v363, 0.0
        %v396 = vmax.f32 %v364, 0.0
        %v397 = vmax.f32 %v365, 0.0
        %v398 = vmax.f32 %v366, 0.0
        %v399 = vmax.f32 %v367, 0.0
        %v400 = vmax.f32 %v368, 0.0
        %v401 = vmax.f32 %v369, 0.0
        %v402 = vmax.f32 %v370, 0.0
        %v403 = vmax.f32 %v371, 0.0
        %v404 = vmax.f32 %v372, 0.0
        %v405 = vmax.f32 %v373, 0.0
        %v406 = vmax.f32 %v374, 0.0
        %v407 = vmax.f32 %v375, 0.0
        %v408 = vmax.f32 %v376, 0.0
        %v409 = vmax.f32 %v377, 0.0
        %v410 = vmax.f32 %v378, 0.0
        %v411 = vmax.f32 %v379, 0.0
        %v412 = vmax.f32 %v380, 0.0
        %v413 = vmax.f32 %v381, 0.0
        %v414 = vmax.f32 %v382, 0.0
        %v415 = vmax.f32 %v383, 0.0
        %v416 = vmax.f32 %v384, 0.0
        %v417 = vmax.f32 %v385, 0.0
        %v418 = vmax.f32 %v386, 0.0
        %v419 = vmax.f32 %v387, 0.0
        %v420 = vmul.f32 %v256, %v319
        %v421 = vmul.f32 %v257, %v319
        %v422 = vmul.f32 %v260, %v319
        %v423 = vmul.f32 %v261, %v319
        %v424 = vmul.f32 %v264, %v319
        %v425 = vmul.f32 %v265, %v319
        %v426 = vmul.f32 %v268, %v319
        %v427 = vmul.f32 %v269, %v319
        %v428 = vmul.f32 %v272, %v319
        %v429 = vmul.f32 %v273, %v319
        %v430 = vmul.f32 %v276, %v319
        %v431 = vmul.f32 %v277, %v319
        %v432 = vmul.f32 %v280, %v319
        %v433 = vmul.f32 %v281, %v319
        %v434 = vmul.f32 %v284, %v319
        %v435 = vmul.f32 %v285, %v319
        %v436 = vmul.f32 %v288, %v319
        %v437 = vmul.f32 %v289, %v319
        %v438 = vmul.f32 %v292, %v319
        %v439 = vmul.f32 %v293, %v319
        %v440 = vmul.f32 %v296, %v319
        %v441 = vmul.f32 %v297, %v319
        %v442 = vmul.f32 %v300, %v319
        %v443 = vmul.f32 %v301, %v319
        %v444 = vmul.f32 %v304, %v319
        %v445 = vmul.f32 %v305, %v319
        %v446 = vmul.f32 %v308, %v319
        %v447 = vmul.f32 %v309, %v319
        %v448 = vmul.f32 %v312, %v319
        %v449 = vmul.f32 %v313, %v319
        %v450 = vmul.f32 %v316, %v319
        %v451 = vmul.f32 %v317, %v319
        %v452 = vadd.f32 %v420, %v354
        %v453 = vadd.f32 %v421, %v354
        %v454 = vadd.f32 %v422, %v354
        %v455 = vadd.f32 %v423, %v354
        %v456 = vadd.f32 %v424, %v354
        %v457 = vadd.f32 %v425, %v354
        %v458 = vadd.f32 %v426, %v354
        %v459 = vadd.f32 %v427, %v354
        %v460 = vadd.f32 %v428, %v354
        %v461 = vadd.f32 %v429, %v354
        %v462 = vadd.f32 %v430, %v354
        %v463 = vadd.f32 %v431, %v354
        %v464 = vadd.f32 %v432, %v354
        %v465 = vadd.f32 %v433, %v354
        %v466 = vadd.f32 %v434, %v354
        %v467 = vadd.f32 %v435, %v354
        %v468 = vadd.f32 %v436, %v354
        %v469 = vadd.f32 %v437, %v354
        %v470 = vadd.f32 %v438, %v354
        %v471 = vadd.f32 %v439, %v354
        %v472 = vadd.f32 %v440, %v354
        %v473 = vadd.f32 %v441, %v354
        %v474 = vadd.f32 %v442, %v354
        %v475 = vadd.f32 %v443, %v354
        %v476 = vadd.f32 %v444, %v354
        %v477 = vadd.f32 %v445, %v354
        %v478 = vadd.f32 %v446, %v354
        %v479 = vadd.f32 %v447, %v354
        %v480 = vadd.f32 %v448, %v354
        %v481 = vadd.f32 %v449, %v354
        %v482 = vadd.f32 %v450, %v354
        %v483 = vadd.f32 %v451, %v354
        %v484 = vmax.f32 %v452, 0.0
        %v485 = vmax.f32 %v453, 0.0
        %v486 = vmax.f32 %v454, 0.0
        %v487 = vmax.f32 %v455, 0.0
        %v488 = vmax.f32 %v456, 0.0
        %v489 = vmax.f32 %v457, 0.0
        %v490 = vmax.f32 %v458, 0.0
        %v491 = vmax.f32 %v459, 0.0
        %v492 = vmax.f32 %v460, 0.0
        %v493 = vmax.f32 %v461, 0.0
        %v494 = vmax.f32 %v462, 0.0
        %v495 = vmax.f32 %v463, 0.0
        %v496 = vmax.f32 %v464, 0.0
        %v497 = vmax.f32 %v465, 0.0
        %v498 = vmax.f32 %v466, 0.0
        %v499 = vmax.f32 %v467, 0.0
        %v500 = vmax.f32 %v468, 0.0
        %v501 = vmax.f32 %v469, 0.0
        %v502 = vmax.f32 %v470, 0.0
        %v503 = vmax.f32 %v471, 0.0
        %v504 = vmax.f32 %v472, 0.0
        %v505 = vmax.f32 %v473, 0.0
        %v506 = vmax.f32 %v474, 0.0
        %v507 = vmax.f32 %v475, 0.0
        %v508 = vmax.f32 %v476, 0.0
        %v509 = vmax.f32 %v477, 0.0
        %v510 = vmax.f32 %v478, 0.0
        %v511 = vmax.f32 %v479, 0.0
        %v512 = vmax.f32 %v480, 0.0
        %v513 = vmax.f32 %v481, 0.0
        %v514 = vmax.f32 %v482, 0.0
        %v515 = vmax.f32 %v483, 0.0
        %v516 = vadd.f32 %v388, %v484
        %v517 = vadd.f32 %v389, %v485
        %v518 = vadd.f32 %v390, %v486
        %v519 = vadd.f32 %v391, %v487
        %v520 = vadd.f32 %v392, %v488
        %v521 = vadd.f32 %v393, %v489
        %v522 = vadd.f32 %v394, %v490
        %v523 = vadd.f32 %v395, %v491
        %v524 = vadd.f32 %v396, %v492
        %v525 = vadd.f32 %v397, %v493
        %v526 = vadd.f32 %v398, %v494
        %v527 = vadd.f32 %v399, %v495
        %v528 = vadd.f32 %v400, %v496
        %v529 = vadd.f32 %v401, %v497
        %v530 = vadd.f32 %v402, %v498
        %v531 = vadd.f32 %v403, %v499
        %v532 = vadd.f32 %v404, %v500
        %v533 = vadd.f32 %v405, %v501
        %v534 = vadd.f32 %v406, %v502
        %v535 = vadd.f32 %v407, %v503
        %v536 = vadd.f32 %v408, %v504
        %v537 = vadd.f32 %v409, %v505
        %v538 = vadd.f32 %v410, %v506
        %v539 = vadd.f32 %v411, %v507
        %v540 = vadd.f32 %v412, %v508
        %v541 = vadd.f32 %v413, %v509
        %v542 = vadd.f32 %v414, %v510
        %v543 = vadd.f32 %v415, %v511
        %v544 = vadd.f32 %v416, %v512
        %v545 = vadd.f32 %v417, %v513
        %v546 = vadd.f32 %v418, %v514
        %v547 = vadd.f32 %v419, %v515
        %v548 = vpack.c.bf16 %v517, %v516
        %v549 = vpack.c.bf16 %v519, %v518
        %v550 = vpack.c.bf16 %v521, %v520
        %v551 = vpack.c.bf16 %v523, %v522
        %v552 = vpack.c.bf16 %v525, %v524
        %v553 = vpack.c.bf16 %v527, %v526
        %v554 = vpack.c.bf16 %v529, %v528
        %v555 = vpack.c.bf16 %v531, %v530
        %v556 = vpack.c.bf16 %v533, %v532
        %v557 = vpack.c.bf16 %v535, %v534
        %v558 = vpack.c.bf16 %v537, %v536
        %v559 = vpack.c.bf16 %v539, %v538
        %v560 = vpack.c.bf16 %v541, %v540
        %v561 = vpack.c.bf16 %v543, %v542
        %v562 = vpack.c.bf16 %v545, %v544
        %v563 = vpack.c.bf16 %v547, %v546
        %v564 = vld [vmem:[#allocation7] sm:$0xf]
        %v565 = vld [vmem:[#allocation7 + $0x4] sm:$0xf]
        %v566 = vld [vmem:[#allocation7 + $0x8] sm:$0xf]
        %v567 = vld [vmem:[#allocation7 + $0xc] sm:$0xf]
        %v568 = vld [vmem:[#allocation7 + $0x10] sm:$0xf]
        %v569 = vld [vmem:[#allocation7 + $0x14] sm:$0xf]
        %v570 = vld [vmem:[#allocation7 + $0x18] sm:$0xf]
        %v571 = vld [vmem:[#allocation7 + $0x1c] sm:$0xf]
        %v572 = vld [vmem:[#allocation7 + $0x20] sm:$0xf]
        %v573 = vld [vmem:[#allocation7 + $0x24] sm:$0xf]
        %v574 = vld [vmem:[#allocation7 + $0x28] sm:$0xf]
        %v575 = vld [vmem:[#allocation7 + $0x2c] sm:$0xf]
        %v576 = vld [vmem:[#allocation7 + $0x30] sm:$0xf]
        %v577 = vld [vmem:[#allocation7 + $0x34] sm:$0xf]
        %v578 = vld [vmem:[#allocation7 + $0x38] sm:$0xf]
        %v579 = vld [vmem:[#allocation7 + $0x3c] sm:$0xf]
        %v596 = vunpack.c.l.b16 %v564
        %v597 = vunpack.c.l.b16 %v565
        %v598 = vunpack.c.l.b16 %v566
        %v599 = vunpack.c.l.b16 %v567
        %v600 = vunpack.c.l.b16 %v568
        %v601 = vunpack.c.l.b16 %v569
        %v602 = vunpack.c.l.b16 %v570
        %v603 = vunpack.c.l.b16 %v571
        %v604 = vunpack.c.l.b16 %v572
        %v605 = vunpack.c.l.b16 %v573
        %v606 = vunpack.c.l.b16 %v574
        %v607 = vunpack.c.l.b16 %v575
        %v608 = vunpack.c.l.b16 %v576
        %v609 = vunpack.c.l.b16 %v577
        %v610 = vunpack.c.l.b16 %v578
        %v611 = vunpack.c.l.b16 %v579
        %v612 = vpack.c.b16 %v597, %v596
        %v613 = vpack.c.b16 %v599, %v598
        %v614 = vpack.c.b16 %v601, %v600
        %v615 = vpack.c.b16 %v603, %v602
        %v616 = vpack.c.b16 %v605, %v604
        %v617 = vpack.c.b16 %v607, %v606
        %v618 = vpack.c.b16 %v609, %v608
        %v619 = vpack.c.b16 %v611, %v610
        %628 = vmatpush.bf16.msra.mxu0 %v619
        %629 = vmatpush.bf16.msra.mxu0 %v618
        %630 = vmatpush.bf16.msra.mxu0 %v617
        %631 = vmatpush.bf16.msra.mxu0 %v616
        %632 = vmatpush.bf16.msra.mxu0 %v615
        %633 = vmatpush.bf16.msra.mxu0 %v614
        %634 = vmatpush.bf16.msra.mxu0 %v613
        %635 = vmatpush.bf16.msra.mxu0 %v612
        %636 = vmatmul.bf16.gmra.mxu0 %v548
        %v637 = vpop.f32.mrf.mxu0
        %v638 = vadd.f32 0.0, %v637
        %v639 = vpop.f32.mrf.mxu0
        %v640 = vadd.f32 0.0, %v639
        %641 = vmatmul.bf16.gmra.mxu0 %v549
        %v642 = vpop.f32.mrf.mxu0
        %v643 = vadd.f32 0.0, %v642
        %v644 = vpop.f32.mrf.mxu0
        %v645 = vadd.f32 0.0, %v644
        %646 = vmatmul.bf16.gmra.mxu0 %v550
        %v647 = vpop.f32.mrf.mxu0
        %v648 = vadd.f32 0.0, %v647
        %v649 = vpop.f32.mrf.mxu0
        %v650 = vadd.f32 0.0, %v649
        %651 = vmatmul.bf16.gmra.mxu0 %v551
        %v652 = vpop.f32.mrf.mxu0
        %v653 = vadd.f32 0.0, %v652
        %v654 = vpop.f32.mrf.mxu0
        %v655 = vadd.f32 0.0, %v654
        %656 = vmatmul.bf16.gmra.mxu0 %v552
        %v657 = vpop.f32.mrf.mxu0
        %v658 = vadd.f32 0.0, %v657
        %v659 = vpop.f32.mrf.mxu0
        %v660 = vadd.f32 0.0, %v659
        %661 = vmatmul.bf16.gmra.mxu0 %v553
        %v662 = vpop.f32.mrf.mxu0
        %v663 = vadd.f32 0.0, %v662
        %v664 = vpop.f32.mrf.mxu0
        %v665 = vadd.f32 0.0, %v664
        %666 = vmatmul.bf16.gmra.mxu0 %v554
        %v667 = vpop.f32.mrf.mxu0
        %v668 = vadd.f32 0.0, %v667
        %v669 = vpop.f32.mrf.mxu0
        %v670 = vadd.f32 0.0, %v669
        %671 = vmatmul.bf16.gmra.mxu0 %v555
        %v672 = vpop.f32.mrf.mxu0
        %v673 = vadd.f32 0.0, %v672
        %v674 = vpop.f32.mrf.mxu0
        %v675 = vadd.f32 0.0, %v674
        %676 = vmatmul.bf16.gmra.mxu0 %v556
        %v677 = vpop.f32.mrf.mxu0
        %v678 = vadd.f32 0.0, %v677
        %v679 = vpop.f32.mrf.mxu0
        %v680 = vadd.f32 0.0, %v679
        %681 = vmatmul.bf16.gmra.mxu0 %v557
        %v682 = vpop.f32.mrf.mxu0
        %v683 = vadd.f32 0.0, %v682
        %v684 = vpop.f32.mrf.mxu0
        %v685 = vadd.f32 0.0, %v684
        %686 = vmatmul.bf16.gmra.mxu0 %v558
        %v687 = vpop.f32.mrf.mxu0
        %v688 = vadd.f32 0.0, %v687
        %v689 = vpop.f32.mrf.mxu0
        %v690 = vadd.f32 0.0, %v689
        %691 = vmatmul.bf16.gmra.mxu0 %v559
        %v692 = vpop.f32.mrf.mxu0
        %v693 = vadd.f32 0.0, %v692
        %v694 = vpop.f32.mrf.mxu0
        %v695 = vadd.f32 0.0, %v694
        %696 = vmatmul.bf16.gmra.mxu0 %v560
        %v697 = vpop.f32.mrf.mxu0
        %v698 = vadd.f32 0.0, %v697
        %v699 = vpop.f32.mrf.mxu0
        %v700 = vadd.f32 0.0, %v699
        %701 = vmatmul.bf16.gmra.mxu0 %v561
        %v702 = vpop.f32.mrf.mxu0
        %v703 = vadd.f32 0.0, %v702
        %v704 = vpop.f32.mrf.mxu0
        %v705 = vadd.f32 0.0, %v704
        %706 = vmatmul.bf16.gmra.mxu0 %v562
        %v707 = vpop.f32.mrf.mxu0
        %v708 = vadd.f32 0.0, %v707
        %v709 = vpop.f32.mrf.mxu0
        %v710 = vadd.f32 0.0, %v709
        %711 = vmatmul.bf16.gmra.mxu0 %v563
        %v712 = vpop.f32.mrf.mxu0
        %v713 = vadd.f32 0.0, %v712
        %v714 = vpop.f32.mrf.mxu0
        %v715 = vadd.f32 0.0, %v714
        %716 = vdwg.mxu0
        %717 = vst [vmem:[%s249] sm:$0xff] %v638
        %718 = vst [vmem:[%s249 + $0x8] sm:$0xff] %v640
        %719 = vst [vmem:[%s249 + $0x10] sm:$0xff] %v643
        %720 = vst [vmem:[%s249 + $0x18] sm:$0xff] %v645
        %721 = vst [vmem:[%s249 + $0x20] sm:$0xff] %v648
        %722 = vst [vmem:[%s249 + $0x28] sm:$0xff] %v650
        %723 = vst [vmem:[%s249 + $0x30] sm:$0xff] %v653
        %724 = vst [vmem:[%s249 + $0x38] sm:$0xff] %v655
        %725 = vst [vmem:[%s249 + $0x40] sm:$0xff] %v658
        %726 = vst [vmem:[%s249 + $0x48] sm:$0xff] %v660
        %727 = vst [vmem:[%s249 + $0x50] sm:$0xff] %v663
        %728 = vst [vmem:[%s249 + $0x58] sm:$0xff] %v665
        %729 = vst [vmem:[%s249 + $0x60] sm:$0xff] %v668
        %730 = vst [vmem:[%s249 + $0x68] sm:$0xff] %v670
        %731 = vst [vmem:[%s249 + $0x70] sm:$0xff] %v673
        %732 = vst [vmem:[%s249 + $0x78] sm:$0xff] %v675
        %733 = vst [vmem:[%s249 + $0x80] sm:$0xff] %v678
        %734 = vst [vmem:[%s249 + $0x88] sm:$0xff] %v680
        %735 = vst [vmem:[%s249 + $0x90] sm:$0xff] %v683
        %736 = vst [vmem:[%s249 + $0x98] sm:$0xff] %v685
        %737 = vst [vmem:[%s249 + $0xa0] sm:$0xff] %v688
        %738 = vst [vmem:[%s249 + $0xa8] sm:$0xff] %v690
        %739 = vst [vmem:[%s249 + $0xb0] sm:$0xff] %v693
        %740 = vst [vmem:[%s249 + $0xb8] sm:$0xff] %v695
        %741 = vst [vmem:[%s249 + $0xc0] sm:$0xff] %v698
        %742 = vst [vmem:[%s249 + $0xc8] sm:$0xff] %v700
        %743 = vst [vmem:[%s249 + $0xd0] sm:$0xff] %v703
        %744 = vst [vmem:[%s249 + $0xd8] sm:$0xff] %v705
        %745 = vst [vmem:[%s249 + $0xe0] sm:$0xff] %v708
        %746 = vst [vmem:[%s249 + $0xe8] sm:$0xff] %v710
        %747 = vst [vmem:[%s249 + $0xf0] sm:$0xff] %v713
        %748 = vst [vmem:[%s249 + $0xf8] sm:$0xff] %v715
        %s749 = sand.u32 %s119, 1
        %s750 = scalar_lea.sflag [#allocation4], %s749
        %s751 = sand.u32 %s119, 1
        %s752 = smul.addr %s751, 256
        %s753 = scalar_lea.vmem [#allocation8], %s752
        // Predicated region
        $region49: #{tpu_custom_call.1} parent=35 // pred_check
          %p754 = pneg %p129
        $region50: #{tpu_custom_call.1} parent=35 // pred_check_branch
          %756 = sbr.rel (%p754) target = $region52
        $region51: #{tpu_custom_call.1} parent=35 // pred_region
          %s757 = smul.u32 16, %s22
          %759 = vsyncadd %s750, 0
          %s760 = smul.addr %s757, 2
          %s761 = smul.addr %s760, 8
          %s762 = scalar_lea.hbm %s4, %s761
          %s763 = sshll.u32 %s753, 4
          %s764 = int_to_ptr.vmem [resolvable:$true] %s763
          %s765 = sshll.u32 %s762, 4
          %s766 = int_to_ptr.hbm [resolvable:$true] %s765
          %771 = dma.vmem_to_hbm [thread:$0]  %s764, 4096, %s766, %s750, 128, 128, 8
        $region52: #{tpu_custom_call.1} parent=35 // pred_fallthru
          _
      $region36: #{tpu_custom_call.1} parent=5 // pred_fallthru
        _
      %p772 = scmp.le.s32.totalorder 2, %s17
      // Predicated region
      $region53: #{tpu_custom_call.1} parent=5 // pred_check
        %p773 = pneg %p772
      $region54: #{tpu_custom_call.1} parent=5 // pred_check_branch
        %775 = sbr.rel (%p773) target = $region56
      $region55: #{tpu_custom_call.1} parent=5 // pred_region
        %s776 = ssub.s32 %s17, 2
        // Predicated region
        $region57: #{tpu_custom_call.1} parent=55 // pred_check
          %p777 = pneg %p135
        $region58: #{tpu_custom_call.1} parent=55 // pred_check_branch
          %779 = sbr.rel (%p777) target = $region60
        $region59: #{tpu_custom_call.1} parent=55 // pred_region
          %s780 = sand.u32 %s120, 1
          %s781 = scalar_lea.sflag [#allocation4], %s780
          %s782 = sand.u32 %s120, 1
          %s783 = smul.addr %s782, 256
          %s784 = scalar_lea.vmem [#allocation8], %s783
          %786 = dma.done %s781, 4096
        $region60: #{tpu_custom_call.1} parent=55 // pred_fallthru
          _
      $region56: #{tpu_custom_call.1} parent=5 // pred_fallthru
        _
    $region6: #{tpu_custom_call.1} parent=1 // loop_footer
      %s21 = sadd.s32 1, %s17
    $region7: #{tpu_custom_call.1} parent=1 // loop_footer_branch
      %16 = sbr.rel target = $region3
    $region8: #{tpu_custom_call.1} parent=1 // loop_exit
      _
    %787 = vsyncpa [#allocation3], 1
    %s788 = scalar_lea.sflag [#allocation3], 1
    %789 = vsyncpa %s788, 1
    %790 = vsyncpa [#allocation6], 1
    %791 = vsyncpa [#allocation4], 1
    %s792 = scalar_lea.sflag [#allocation4], 1
    %793 = vsyncpa %s792, 1

</llo_original>
